<compile_context>
chip_gen: v7x
topology: tpu7x:2x2x1
jax: 0.10.0
libtpu: 0.0.40
codegen_flags: <defaults>
</compile_context>

<pallas_src>
import functools

import jax
import jax.numpy as jnp
from jax import lax
from jax.experimental import pallas as pl
from jax.experimental.pallas import tpu as pltpu


def _round_up(x, m):
    return ((x + m - 1) // m) * m


def _channel_attention_kernel(x_ref, w1_ref, w2_ref, out_ref,
                              sum_acc, max_acc, *,
                              s_total, s_tile, acc_w, reg_fold, mask_last,
                              unroll):
    # x_ref  : (1, C, s_tile)  current spatial block of one batch element
    # w1_ref : (hidden, C)     f1 weight (resident; only read in finalize)
    # w2_ref : (C, hidden)     f2 weight (resident; only read in finalize)
    # out_ref: (1, C, 1)       channel gates for this batch element
    # sum_acc/max_acc : (C, acc_w) f32 VMEM accumulators (narrow, deferred)
    s_idx = pl.program_id(1)
    n_s = pl.num_programs(1)
    C = sum_acc.shape[0]
    n_chunks = s_tile // acc_w

    @pl.when(s_idx == 0)
    def _init():
        sum_acc[...] = jnp.zeros_like(sum_acc)
        max_acc[...] = jnp.full_like(max_acc, -jnp.inf)

    def load_chunk(j, masked):
        off = pl.multiple_of(j * acc_w, acc_w)
        ch = x_ref[0, :, pl.ds(off, acc_w)].astype(jnp.float32)   # (C, acc_w)
        if masked:
            lane = lax.broadcasted_iota(jnp.int32, ch.shape, 1)
            valid = (s_idx * s_tile + off + lane) < s_total
            return jnp.where(valid, ch, 0.0), jnp.where(valid, ch, -jnp.inf)
        return ch, ch

    def accumulate(masked):
        if reg_fold:
            # Fold the whole block into register-resident partials; a single
            # RMW of the small VMEM accumulator per grid step.
            def body(j, carry):
                ps, pm = carry
                cs, cm = load_chunk(j, masked)
                return ps + cs, jnp.maximum(pm, cm)
            init = (jnp.zeros((C, acc_w), jnp.float32),
                    jnp.full((C, acc_w), -jnp.inf, jnp.float32))
            ps, pm = lax.fori_loop(0, n_chunks, body, init, unroll=unroll)
            sum_acc[...] = sum_acc[...] + ps
            max_acc[...] = jnp.maximum(max_acc[...], pm)
        else:
            # Wide-C fallback: accumulate directly into the small VMEM scratch.
            def body(j, carry):
                cs, cm = load_chunk(j, masked)
                sum_acc[...] = sum_acc[...] + cs
                max_acc[...] = jnp.maximum(max_acc[...], cm)
                return carry
            lax.fori_loop(0, n_chunks, body, 0, unroll=unroll)

    if mask_last:
        # Mask only the clipped boundary block; hot path is unmasked.
        @pl.when(s_idx < n_s - 1)
        def _unmasked():
            accumulate(masked=False)

        @pl.when(s_idx == n_s - 1)
        def _masked():
            accumulate(masked=True)
    else:
        accumulate(masked=False)

    @pl.when(s_idx == n_s - 1)
    def _finalize():
        avg = jnp.sum(sum_acc[...], axis=-1, keepdims=True) * (1.0 / float(s_total))
        mx = jnp.max(max_acc[...], axis=-1, keepdims=True)
        pooled = jnp.concatenate([avg, mx], axis=1)                    # (C, 2)
        # Fused MLP for both branches: one dot per layer.
        # TODO(synk): these N=2 matmuls could be emitted as pooled (B, C, 2)
        # and finished in XLA to drop the weight buffers; negligible either way.
        h = jnp.maximum(
            jnp.dot(w1_ref[...], pooled,
                    preferred_element_type=jnp.float32), 0.0)          # (hidden, 2)
        y = jnp.dot(w2_ref[...], h,
                    preferred_element_type=jnp.float32)                # (C, 2)
        gate = jax.nn.sigmoid(y[:, 0:1] * y[:, 1:2])                   # (C, 1)
        out_ref[...] = gate.reshape(1, C, 1).astype(out_ref.dtype)


def channel_attention(x, w1, w2, *, s_tile=None):
    """x: (B, C, D, H, W).  w1: (C//r, C, 1,1,1).  w2: (C, C//r, 1,1,1).

    Returns (B, C, 1, 1, 1) float32, matching the PyTorch module output.
    """
    B, C, D, H, W = x.shape
    S = D * H * W
    hidden = w1.shape[0]

    x_flat = x.reshape(B, C, S)
    itemsize = x_flat.dtype.itemsize
    w1m = w1.reshape(hidden, C).astype(jnp.float32)   # (hidden, C)
    w2m = w2.reshape(C, hidden).astype(jnp.float32)   # (C, hidden)

    # ---- per-generation VMEM budget --------------------------------------
    try:
        vmem_cap = int(pltpu.get_tpu_info().vmem_capacity_bytes)
    except Exception:
        vmem_cap = 64 * 1024 * 1024                    # conservative fallback
    if vmem_cap >= 100 * 1024 * 1024:                  # v5e / v6e (128 MiB phys)
        vmem_budget = 104 * 1024 * 1024
    else:                                              # v7x (64 MiB phys) / unknown
        vmem_budget = max(24 * 1024 * 1024,
                          min(vmem_cap - 12 * 1024 * 1024, 52 * 1024 * 1024))

    # ---- streaming block (lane) size --------------------------------------
    if s_tile is None:
        # Multi-MiB blocks amortize the ~0.35 us per-grid-step overhead.
        target_block = max(1 << 20, min(8 << 20, (vmem_budget - (6 << 20)) // 3))
        s_tile = target_block // (C * itemsize)
    s_tile = max(128, (int(s_tile) // 128) * 128)
    s_tile = min(s_tile, _round_up(S, 128))            # never wider than needed

    # ---- accumulator / register-fold chunk width --------------------------
    reg_fold = C <= 64                                 # keep carry <= ~16 vregs
    if reg_fold:
        sub_groups = max(1, (C + 7) // 8)
        acc_w = max(128, min(512, (1024 // sub_groups // 128) * 128))
    else:
        acc_w = 512
    acc_w = min(acc_w, s_tile)
    if s_tile % acc_w != 0:
        acc_w = 128                                    # 128 always divides s_tile
    n_chunks = s_tile // acc_w
    unroll = max(1, min(n_chunks, 8))

    n_s = pl.cdiv(S, s_tile)
    mask_last = (S % s_tile) != 0                      # clipped boundary block

    kernel = functools.partial(
        _channel_attention_kernel,
        s_total=S, s_tile=s_tile, acc_w=acc_w, reg_fold=reg_fold,
        mask_last=mask_last, unroll=unroll)

    # Scoped VMEM: double-buffered input block + small accumulators +
    # resident weights + headroom, clamped to the per-generation budget.
    x_block_bytes = C * s_tile * itemsize
    acc_bytes = 2 * 4 * C * acc_w
    w_bytes = 4 * 4 * hidden * C
    vmem_limit = int(min(vmem_budget,
                         max(8 << 20,
                             2 * x_block_bytes + acc_bytes + w_bytes + (2 << 20))))

    out = pl.pallas_call(
        kernel,
        out_shape=jax.ShapeDtypeStruct((B, C, 1), jnp.float32),
        grid_spec=pltpu.PrefetchScalarGridSpec(
            num_scalar_prefetch=0,
            grid=(B, n_s),
            in_specs=[
                pl.BlockSpec((1, C, s_tile), lambda b, s: (b, 0, s)),
                pl.BlockSpec((hidden, C), lambda b, s: (0, 0)),
                pl.BlockSpec((C, hidden), lambda b, s: (0, 0)),
            ],
            out_specs=pl.BlockSpec((1, C, 1), lambda b, s: (b, 0, 0)),
            scratch_shapes=[
                pltpu.VMEM((C, acc_w), jnp.float32),   # running sum
                pltpu.VMEM((C, acc_w), jnp.float32),   # running max
            ],
        ),
        compiler_params=pltpu.CompilerParams(
            dimension_semantics=("parallel", "arbitrary"),
            vmem_limit_bytes=vmem_limit,
        ),
    )(x_flat, w1m, w2m)

    # TODO(synk): on v7x with B==1 the second TensorCore idles; a core-split of
    # the S reduction (partials combined in XLA) would roughly double throughput.
    return out.reshape(B, C, 1, 1, 1)


def channel_attention_ref(x, w1, w2):
    """Pure-JAX reference mirroring the PyTorch forward."""
    B, C = x.shape[:2]
    hidden = w1.shape[0]
    w1m = w1.reshape(hidden, C)
    w2m = w2.reshape(C, hidden)
    avg = jnp.mean(x.astype(jnp.float32), axis=(2, 3, 4))   # (B, C)
    mx = jnp.max(x.astype(jnp.float32), axis=(2, 3, 4))     # (B, C)
    a = jnp.maximum(avg @ w1m.T, 0.0) @ w2m.T               # (B, C)
    m = jnp.maximum(mx @ w1m.T, 0.0) @ w2m.T                # (B, C)
    return jax.nn.sigmoid(a * m).reshape(B, C, 1, 1, 1)


if __name__ == "__main__":
    key = jax.random.PRNGKey(0)
    kx1, kx2, k1, k2 = jax.random.split(key, 4)

    B, C, ratio = 2, 32, 16
    hidden = C // ratio

    # Conv3d weights (out_ch, in_ch, 1, 1, 1), bias=False.
    w1 = (jax.random.normal(k1, (hidden, C, 1, 1, 1), dtype=jnp.float32)
          * (1.0 / jnp.sqrt(C)))
    w2 = (jax.random.normal(k2, (C, hidden, 1, 1, 1), dtype=jnp.float32)
          * (1.0 / jnp.sqrt(hidden)))

    # Case 1: S = 256, default (VMEM-budgeted) tile -> single S step.
    x1 = jax.random.normal(kx1, (B, C, 4, 8, 8), dtype=jnp.float32)
    out1 = jax.block_until_ready(channel_attention(x1, w1, w2))
    ref1 = channel_attention_ref(x1, w1, w2)
    assert out1.shape == (B, C, 1, 1, 1)
    assert jnp.allclose(out1, ref1, atol=1e-5, rtol=1e-5)

    # Case 2: S = 256 with s_tile=128 -> 2-step reduction grid, no masking.
    out1b = jax.block_until_ready(channel_attention(x1, w1, w2, s_tile=128))
    assert jnp.allclose(out1b, ref1, atol=1e-5, rtol=1e-5)

    # Case 3: ragged S = 210 -> clipped boundary block, masked last step only.
    x2 = jax.random.normal(kx2, (B, C, 5, 6, 7), dtype=jnp.float32)
    out2 = jax.block_until_ready(channel_attention(x2, w1, w2))
    ref2 = channel_attention_ref(x2, w1, w2)
    assert out2.shape == (B, C, 1, 1, 1)
    assert jnp.allclose(out2, ref2, atol=1e-5, rtol=1e-5)

    # Case 4: ragged S = 210 with s_tile=128 -> multi-step grid + masked tail.
    out2b = jax.block_until_ready(channel_attention(x2, w1, w2, s_tile=128))
    assert jnp.allclose(out2b, ref2, atol=1e-5, rtol=1e-5)

    print("KERNEL_OK")
</pallas_src>

<mosaic_0001>
module attributes {stable_mosaic.version = 11 : i64} {
  func.func @_channel_attention_kernel(%arg0: i32, %arg1: i32, %arg2: memref<1x32x256xf32, #tpu.memory_space<vmem>>, %arg3: memref<2x32xf32, #tpu.memory_space<vmem>>, %arg4: memref<32x2xf32, #tpu.memory_space<vmem>>, %arg5: memref<1x32x1xf32, #tpu.memory_space<vmem>>, %arg6: memref<32x256xf32, #tpu.memory_space<vmem>>, %arg7: memref<32x256xf32, #tpu.memory_space<vmem>>) attributes {dimension_semantics = [#tpu.dimension_semantics<parallel>, #tpu.dimension_semantics<arbitrary>], iteration_bounds = array<i64: 2, 1>, scalar_prefetch = 0 : i64, scratch_operands = 2 : i64, tpu.core_type = #tpu.core_type<tc>, window_params = [{transform_indices = @transform_0, window_bounds = array<i64: 1, 32, 256>}, {pipeline_mode = #tpu.pipeline_mode<synchronous>, transform_indices = @transform_1, window_bounds = array<i64: 2, 32>}, {pipeline_mode = #tpu.pipeline_mode<synchronous>, transform_indices = @transform_2, window_bounds = array<i64: 32, 2>}, {transform_indices = @transform_3, window_bounds = array<i64: 1, 32, 1>}]} {
    %c0_i32 = arith.constant 0 : i32
    %0 = arith.cmpi eq, %arg1, %c0_i32 : i32
    %1 = arith.extui %0 : i1 to i32
    %c0_i32_0 = arith.constant 0 : i32
    %2 = arith.cmpi ne, %1, %c0_i32_0 : i32
    scf.if %2 {
      %cst_14 = arith.constant 0.000000e+00 : f32
      %21 = vector.broadcast %cst_14 : f32 to vector<32x256xf32>
      %c0_15 = arith.constant 0 : index
      %c0_16 = arith.constant 0 : index
      %22 = vector.load %arg6[%c0_15, %c0_16] : memref<32x256xf32, #tpu.memory_space<vmem>>, vector<32x256xf32>
      tpu.vector_store %arg6[%c0_15, %c0_16], %21 {strides = array<i32>} : memref<32x256xf32, #tpu.memory_space<vmem>>, vector<32x256xf32>,
      %cst_17 = arith.constant 0xFF800000 : f32
      %23 = vector.broadcast %cst_17 : f32 to vector<32x256xf32>
      %c0_18 = arith.constant 0 : index
      %c0_19 = arith.constant 0 : index
      %24 = vector.load %arg7[%c0_18, %c0_19] : memref<32x256xf32, #tpu.memory_space<vmem>>, vector<32x256xf32>
      tpu.vector_store %arg7[%c0_18, %c0_19], %23 {strides = array<i32>} : memref<32x256xf32, #tpu.memory_space<vmem>>, vector<32x256xf32>,
    } else {
    }
    %cst = arith.constant 0.000000e+00 : f32
    %3 = vector.broadcast %cst : f32 to vector<32x256xf32>
    %cst_1 = arith.constant 0xFF800000 : f32
    %4 = vector.broadcast %cst_1 : f32 to vector<32x256xf32>
    %c0_i32_2 = arith.constant 0 : i32
    %c256_i32 = arith.constant 256 : i32
    %5 = arith.muli %c0_i32_2, %c256_i32 : i32
    %6 = tpu.assume_multiple %5, 256 : i32
    %c0 = arith.constant 0 : index
    %c0_3 = arith.constant 0 : index
    %7 = arith.index_cast %6 : i32 to index
    %8 = vector.load %arg2[%c0, %c0_3, %7] : memref<1x32x256xf32, #tpu.memory_space<vmem>>, vector<1x32x256xf32>
    %9 = vector.shape_cast %8 : vector<1x32x256xf32> to vector<32x256xf32>
    %10 = arith.addf %3, %9 : vector<32x256xf32>
    %11 = arith.maximumf %4, %9 : vector<32x256xf32>
    %c1_i32 = arith.constant 1 : i32
    %c0_4 = arith.constant 0 : index
    %c0_5 = arith.constant 0 : index
    %12 = vector.load %arg6[%c0_4, %c0_5] : memref<32x256xf32, #tpu.memory_space<vmem>>, vector<32x256xf32>
    %13 = arith.addf %12, %10 : vector<32x256xf32>
    %c0_6 = arith.constant 0 : index
    %c0_7 = arith.constant 0 : index
    %14 = vector.load %arg6[%c0_6, %c0_7] : memref<32x256xf32, #tpu.memory_space<vmem>>, vector<32x256xf32>
    tpu.vector_store %arg6[%c0_6, %c0_7], %13 {strides = array<i32>} : memref<32x256xf32, #tpu.memory_space<vmem>>, vector<32x256xf32>,
    %c0_8 = arith.constant 0 : index
    %c0_9 = arith.constant 0 : index
    %15 = vector.load %arg7[%c0_8, %c0_9] : memref<32x256xf32, #tpu.memory_space<vmem>>, vector<32x256xf32>
    %16 = arith.maximumf %15, %11 : vector<32x256xf32>
    %c0_10 = arith.constant 0 : index
    %c0_11 = arith.constant 0 : index
    %17 = vector.load %arg7[%c0_10, %c0_11] : memref<32x256xf32, #tpu.memory_space<vmem>>, vector<32x256xf32>
    tpu.vector_store %arg7[%c0_10, %c0_11], %16 {strides = array<i32>} : memref<32x256xf32, #tpu.memory_space<vmem>>, vector<32x256xf32>,
    %c0_i32_12 = arith.constant 0 : i32
    %18 = arith.cmpi eq, %arg1, %c0_i32_12 : i32
    %19 = arith.extui %18 : i1 to i32
    %c0_i32_13 = arith.constant 0 : i32
    %20 = arith.cmpi ne, %19, %c0_i32_13 : i32
    scf.if %20 {
      %c0_14 = arith.constant 0 : index
      %c0_15 = arith.constant 0 : index
      %21 = vector.load %arg6[%c0_14, %c0_15] : memref<32x256xf32, #tpu.memory_space<vmem>>, vector<32x256xf32>
      %cst_16 = arith.constant dense<0.000000e+00> : vector<32xf32>
      %22 = vector.multi_reduction <add>, %21, %cst_16 [1] : vector<32x256xf32> to vector<32xf32>
      %23 = vector.shape_cast %22 : vector<32xf32> to vector<32x1xf32>
      %cst_17 = arith.constant 3.906250e-03 : f32
      %24 = vector.broadcast %cst_17 : f32 to vector<32x1xf32>
      %25 = arith.mulf %23, %24 : vector<32x1xf32>
      %c0_18 = arith.constant 0 : index
      %c0_19 = arith.constant 0 : index
      %26 = vector.load %arg7[%c0_18, %c0_19] : memref<32x256xf32, #tpu.memory_space<vmem>>, vector<32x256xf32>
      %cst_20 = arith.constant dense<0xFF800000> : vector<32xf32>
      %27 = vector.multi_reduction <maximumf>, %26, %cst_20 [1] : vector<32x256xf32> to vector<32xf32>
      %28 = vector.shape_cast %27 : vector<32xf32> to vector<32x1xf32>
      %29 = tpu.concatenate %25, %28 in 1 : vector<32x1xf32>, vector<32x1xf32> -> vector<32x2xf32>
      %c0_21 = arith.constant 0 : index
      %c0_22 = arith.constant 0 : index
      %30 = vector.load %arg3[%c0_21, %c0_22] : memref<2x32xf32, #tpu.memory_space<vmem>>, vector<2x32xf32>
      %cst_23 = arith.constant dense<0.000000e+00> : vector<2x2xf32>
      %31 = tpu.matmul %30, %29, %cst_23 {dimension_numbers = #tpu.dot_dimension_numbers<[1], [0], [0], [1], [0, 0, 1, 1], [], []>} : vector<2x32xf32>, vector<32x2xf32>, vector<2x2xf32> -> vector<2x2xf32>
      %cst_24 = arith.constant 0.000000e+00 : f32
      %32 = vector.broadcast %cst_24 : f32 to vector<2x2xf32>
      %33 = arith.maximumf %31, %32 : vector<2x2xf32>
      %c0_25 = arith.constant 0 : index
      %c0_26 = arith.constant 0 : index
      %34 = vector.load %arg4[%c0_25, %c0_26] : memref<32x2xf32, #tpu.memory_space<vmem>>, vector<32x2xf32>
      %cst_27 = arith.constant dense<0.000000e+00> : vector<32x2xf32>
      %35 = tpu.matmul %34, %33, %cst_27 {dimension_numbers = #tpu.dot_dimension_numbers<[1], [0], [0], [1], [0, 0, 1, 1], [], []>} : vector<32x2xf32>, vector<2x2xf32>, vector<32x2xf32> -> vector<32x2xf32>
      %36 = vector.extract_strided_slice %35 {offsets = [0, 0], sizes = [32, 1], strides = [1, 1]} : vector<32x2xf32> to vector<32x1xf32>
      %37 = vector.extract_strided_slice %35 {offsets = [0, 1], sizes = [32, 1], strides = [1, 1]} : vector<32x2xf32> to vector<32x1xf32>
      %38 = arith.mulf %36, %37 : vector<32x1xf32>
      %39 = arith.negf %38 : vector<32x1xf32>
      %40 = math.exp %39 : vector<32x1xf32>
      %cst_28 = arith.constant 1.000000e+00 : f32
      %41 = vector.broadcast %cst_28 : f32 to vector<32x1xf32>
      %42 = arith.addf %41, %40 : vector<32x1xf32>
      %43 = arith.divf %41, %42 : vector<32x1xf32>
      %44 = vector.shape_cast %43 : vector<32x1xf32> to vector<1x32x1xf32>
      %c0_29 = arith.constant 0 : index
      %c0_30 = arith.constant 0 : index
      %c0_31 = arith.constant 0 : index
      %45 = vector.load %arg5[%c0_29, %c0_30, %c0_31] : memref<1x32x1xf32, #tpu.memory_space<vmem>>, vector<1x32x1xf32>
      tpu.vector_store %arg5[%c0_29, %c0_30, %c0_31], %44 {strides = array<i32>} : memref<1x32x1xf32, #tpu.memory_space<vmem>>, vector<1x32x1xf32>,
    } else {
    }
    return
  }
  func.func @transform_0(%arg0: i32, %arg1: i32) -> (i32, i32, i32) {
    %c0_i32 = arith.constant 0 : i32
    %c0_i32_0 = arith.constant 0 : i32
    return %arg0, %c0_i32, %arg1 : i32, i32, i32
  }
  func.func @transform_1(%arg0: i32, %arg1: i32) -> (i32, i32) {
    %c0_i32 = arith.constant 0 : i32
    %c0_i32_0 = arith.constant 0 : i32
    %c0_i32_1 = arith.constant 0 : i32
    return %c0_i32, %c0_i32_0 : i32, i32
  }
  func.func @transform_2(%arg0: i32, %arg1: i32) -> (i32, i32) {
    %c0_i32 = arith.constant 0 : i32
    %c0_i32_0 = arith.constant 0 : i32
    %c0_i32_1 = arith.constant 0 : i32
    return %c0_i32, %c0_i32_0 : i32, i32
  }
  func.func @transform_3(%arg0: i32, %arg1: i32) -> (i32, i32, i32) {
    %c0_i32 = arith.constant 0 : i32
    %c0_i32_0 = arith.constant 0 : i32
    %c0_i32_1 = arith.constant 0 : i32
    return %arg0, %c0_i32, %c0_i32_0 : i32, i32, i32
  }
}

</mosaic_0001>

<llo_original>
// kernel: tpu_custom_call.1
$region0: #{tpu_custom_call.1}
  #allocation0 [shape = 'u32[]', space=smem, size = 0x4, offset = 0x4, fixed_abs, tag = 'smem constant byte address 0x4 - core index']
  #allocation1 [shape = 'u32[144,128]{1,0:T(1,128)}', space=vmem, size = 0x12000, scoped, tag = 'internal scratch']
  #allocation2 [shape = 'f32[32,256]{1,0:T(8,128)}', space=vmem, size = 0x8000, scoped, tag = 'scratch operand']
  #allocation3 [shape = 'f32[32,256]{1,0:T(8,128)}', space=vmem, size = 0x8000, scoped, tag = 'scratch operand']
  %s0 = inlined_call_operand.hbm [shape: f32[2,32,256], index: 0, kind: input, shape index: {}]
  %s1 = inlined_call_operand.vmem [shape: f32[2,32], index: 1, kind: input, shape index: {}]
  %s2 = inlined_call_operand.vmem [shape: f32[32,2], index: 2, kind: input, shape index: {}]
  %s3 = inlined_call_operand.vmem [shape: f32[2,32,1], index: 3, kind: output, shape index: {}]
  %s4 = sld [smem:[#allocation0]]
  $region57: #{tpu_custom_call.1} parent=0
    _
  %s6 = ssub.s32 1, %s4
  %s7 = scalar_select 0, %s6, %s4
  $region1: #{tpu_custom_call.1} parent=0
    #allocation4 [shape = 'u8[65536]{0}', space=vmem, size = 0x10000, scoped, tag = 'input window, operand 0']
    #allocation5 [shape = 's32[2]{0}', space=sflag, size = 0x8, scoped, tag = 'scoped memory for tpu_custom_call.1']
    %8 = vsyncpa [#allocation5], 0
    %s9 = scalar_lea.sflag [#allocation5], 1
    %10 = vsyncpa %s9, 0
    loop: start=0, step=1, limit=4
    $region2: #{tpu_custom_call.1} parent=1 // loop_pre_header
      _
    $region3: #{tpu_custom_call.1} parent=1 // loop_header
      %s12 = sphi 0, %s16
      %p13 = scmp.ge.s32.totalorder %s12, 4
      %s19 = sphi 0, %s31
      %s20 = sphi 0, %s27
      %s21 = sphi 0, %s19
      %s22 = sphi 0, %s20
      %s23 = sphi 0, %s21
      %s24 = sphi 0, %s22
      %s36 = sphi 0, %s38
      %s39 = sphi 0, %s36
      %s40 = sphi 0, %s39
      %s56 = sphi 0, %s40
      %s60 = sphi 0, %s60
      %s62 = sphi 0, %s60
      %s63 = sphi 0, %s62
      %s77 = sphi 0, %s63
      %s81 = sphi 0, %s81
      %s83 = sphi 0, %s81
      %s84 = sphi 0, %s83
      %s98 = sphi 0, %s84
      %s104 = sphi 0, %s106
      %s107 = sphi 0, %s104
      %s108 = sphi 0, %s107
      %s124 = sphi 0, %s108
    $region4: #{tpu_custom_call.1} parent=1 // loop_header_branch
      %15 = sbr.rel (%p13) target = $region8
    $region5: #{tpu_custom_call.1} parent=1 // loop_body
      %s17 = ssub.s32 %s12, 1
      %s18 = ssub.s32 %s12, 2
      %s25 = sadd.s32 1, %s20
      %p26 = scmp.ge.s32.totalorder %s25, 1
      %s27 = scalar_select %p26, 0, %s25
      %s28 = sadd.s32 1, %s19
      %s29 = scalar_select %p26, %s28, %s19
      %p30 = scmp.ge.s32.totalorder %s29, 2
      %s31 = scalar_select %p30, 0, %s29
      %s32 = ssub.s32 %s19, %s31
      %s33 = ssub.s32 %s20, %s27
      %s34 = sor.u32 %s32, %s33
      %p35 = scmp.eq.s32.totalorder %s34, 0
      %s37 = sadd.s32 %s36, 1
      %s38 = scalar_select %p35, %s36, %s37
      %p41 = pneg %p35
      %p42 = scmp.eq.s32.totalorder %s12, 1
      %p43 = por %p41, %p42
      %p44 = scmp.ne.s32.totalorder %s36, %s39
      %p45 = scmp.eq.s32.totalorder %s12, 0
      %p46 = por %p44, %p45
      %p47 = scmp.ne.s32.totalorder %s36, %s39
      %p48 = scmp.eq.s32.totalorder %s17, 1
      %p49 = por %p47, %p48
      %p50 = scmp.ne.s32.totalorder %s39, %s40
      %p51 = scmp.eq.s32.totalorder %s17, 0
      %p52 = por %p50, %p51
      %p53 = scmp.ne.s32.totalorder %s39, %s40
      %p54 = scmp.eq.s32.totalorder %s18, 1
      %p55 = por %p53, %p54
      %p57 = scmp.ne.s32.totalorder %s40, %s56
      %p58 = scmp.eq.s32.totalorder %s18, 0
      %p59 = por %p57, %p58
      %s61 = sadd.s32 %s60, 1
      %p64 = scmp.eq.s32.totalorder %s12, 1
      %p65 = scmp.ne.s32.totalorder %s60, %s62
      %p66 = scmp.eq.s32.totalorder %s12, 0
      %p67 = por %p65, %p66
      %p68 = scmp.ne.s32.totalorder %s60, %s62
      %p69 = scmp.eq.s32.totalorder %s17, 1
      %p70 = por %p68, %p69
      %p71 = scmp.ne.s32.totalorder %s62, %s63
      %p72 = scmp.eq.s32.totalorder %s17, 0
      %p73 = por %p71, %p72
      %p74 = scmp.ne.s32.totalorder %s62, %s63
      %p75 = scmp.eq.s32.totalorder %s18, 1
      %p76 = por %p74, %p75
      %p78 = scmp.ne.s32.totalorder %s63, %s77
      %p79 = scmp.eq.s32.totalorder %s18, 0
      %p80 = por %p78, %p79
      %s82 = sadd.s32 %s81, 1
      %p85 = scmp.eq.s32.totalorder %s12, 1
      %p86 = scmp.ne.s32.totalorder %s81, %s83
      %p87 = scmp.eq.s32.totalorder %s12, 0
      %p88 = por %p86, %p87
      %p89 = scmp.ne.s32.totalorder %s81, %s83
      %p90 = scmp.eq.s32.totalorder %s17, 1
      %p91 = por %p89, %p90
      %p92 = scmp.ne.s32.totalorder %s83, %s84
      %p93 = scmp.eq.s32.totalorder %s17, 0
      %p94 = por %p92, %p93
      %p95 = scmp.ne.s32.totalorder %s83, %s84
      %p96 = scmp.eq.s32.totalorder %s18, 1
      %p97 = por %p95, %p96
      %p99 = scmp.ne.s32.totalorder %s84, %s98
      %p100 = scmp.eq.s32.totalorder %s18, 0
      %p101 = por %p99, %p100
      %s102 = ssub.s32 %s19, %s31
      %p103 = scmp.eq.s32.totalorder %s102, 0
      %s105 = sadd.s32 %s104, 1
      %s106 = scalar_select %p103, %s104, %s105
      %p109 = pneg %p103
      %p110 = scmp.eq.s32.totalorder %s12, 1
      %p111 = por %p109, %p110
      %p112 = scmp.ne.s32.totalorder %s104, %s107
      %p113 = scmp.eq.s32.totalorder %s12, 0
      %p114 = por %p112, %p113
      %p115 = scmp.ne.s32.totalorder %s104, %s107
      %p116 = scmp.eq.s32.totalorder %s17, 1
      %p117 = por %p115, %p116
      %p118 = scmp.ne.s32.totalorder %s107, %s108
      %p119 = scmp.eq.s32.totalorder %s17, 0
      %p120 = por %p118, %p119
      %p121 = scmp.ne.s32.totalorder %s107, %s108
      %p122 = scmp.eq.s32.totalorder %s18, 1
      %p123 = por %p121, %p122
      %p125 = scmp.ne.s32.totalorder %s108, %s124
      %p126 = scmp.eq.s32.totalorder %s18, 0
      %p127 = por %p125, %p126
      %p128 = scmp.le.s32.totalorder 1, %s12
      %p129 = scmp.lt.s32.totalorder %s12, 3
      %p130 = pnand %p128, %p129
      %p131 = pneg %p130
      // Predicated region
      $region9: #{tpu_custom_call.1} parent=5 // pred_check
        _
      $region10: #{tpu_custom_call.1} parent=5 // pred_check_branch
        %133 = sbr.rel (%p130) target = $region12
      $region11: #{tpu_custom_call.1} parent=5 // pred_region
        %s134 = ssub.s32 %s12, 1
        // Predicated region
        $region13: #{tpu_custom_call.1} parent=11 // pred_check
          %p135 = pneg %p73
        $region14: #{tpu_custom_call.1} parent=11 // pred_check_branch
          %137 = sbr.rel (%p135) target = $region16
        $region15: #{tpu_custom_call.1} parent=11 // pred_region
          _
        $region16: #{tpu_custom_call.1} parent=11 // pred_fallthru
          _
        // Predicated region
        $region17: #{tpu_custom_call.1} parent=11 // pred_check
          %p138 = pneg %p94
        $region18: #{tpu_custom_call.1} parent=11 // pred_check_branch
          %140 = sbr.rel (%p138) target = $region20
        $region19: #{tpu_custom_call.1} parent=11 // pred_region
          _
        $region20: #{tpu_custom_call.1} parent=11 // pred_fallthru
          _
      $region12: #{tpu_custom_call.1} parent=5 // pred_fallthru
        _
      %p141 = scmp.lt.s32.totalorder %s12, 2
      // Predicated region
      $region21: #{tpu_custom_call.1} parent=5 // pred_check
        %p142 = pneg %p141
      $region22: #{tpu_custom_call.1} parent=5 // pred_check_branch
        %144 = sbr.rel (%p142) target = $region24
      $region23: #{tpu_custom_call.1} parent=5 // pred_region
        // Predicated region
        $region25: #{tpu_custom_call.1} parent=23 // pred_check
          %p145 = pneg %p46
        $region26: #{tpu_custom_call.1} parent=23 // pred_check_branch
          %147 = sbr.rel (%p145) target = $region28
        $region27: #{tpu_custom_call.1} parent=23 // pred_region
          %s148 = sand.u32 %s36, 1
          %s149 = scalar_lea.sflag [#allocation5], %s148
          %s150 = sand.u32 %s36, 1
          %s151 = smul.addr %s150, 64
          %s152 = scalar_lea.vmem [#allocation4], %s151
          %s153 = smul.u32 2, %s20
          %s155 = ssub.s32 1024, 1024
          %156 = vsyncadd %s149, %s155
          %s157 = smul.addr %s19, 8
          %s158 = sadd.s32 %s153, %s157
          %s159 = smul.addr %s158, 128
          %s160 = scalar_lea.hbm %s0, %s159
          %s161 = sshll.u32 %s152, 4
          %s162 = int_to_ptr.vmem [resolvable:$true] %s161
          %167 = dma.hbm_to_vmem [thread:$0]  %s160, 1024, %s162, %s149, 256, 256, 16
        $region28: #{tpu_custom_call.1} parent=23 // pred_fallthru
          _
      $region24: #{tpu_custom_call.1} parent=5 // pred_fallthru
        _
      %p168 = scmp.le.s32.totalorder 1, %s12
      %p169 = scmp.lt.s32.totalorder %s12, 3
      %p170 = pnand %p168, %p169
      %p171 = pneg %p170
      // Predicated region
      $region29: #{tpu_custom_call.1} parent=5 // pred_check
        _
      $region30: #{tpu_custom_call.1} parent=5 // pred_check_branch
        %173 = sbr.rel (%p170) target = $region32
      $region31: #{tpu_custom_call.1} parent=5 // pred_region
        %s174 = ssub.s32 %s12, 1
        %s175 = sand.u32 %s39, 1
        %s176 = scalar_lea.sflag [#allocation5], %s175
        %s177 = sand.u32 %s39, 1
        %s178 = smul.addr %s177, 64
        %s179 = scalar_lea.vmem [#allocation4], %s178
        // Predicated region
        $region33: #{tpu_custom_call.1} parent=31 // pred_check
          %p180 = pneg %p52
        $region34: #{tpu_custom_call.1} parent=31 // pred_check_branch
          %182 = sbr.rel (%p180) target = $region36
        $region35: #{tpu_custom_call.1} parent=31 // pred_region
          %183 = dma.done %s176, 1024
        $region36: #{tpu_custom_call.1} parent=31 // pred_fallthru
          _
        %s184 = sand.u32 %s39, 1
        %s185 = scalar_lea.sflag [#allocation5], %s184
        %s186 = sand.u32 %s39, 1
        %s187 = smul.addr %s186, 64
        %s188 = scalar_lea.vmem [#allocation4], %s187
        %p189 = pneg %p52
        %p190 = pneg %p49
        %p191 = pneg %p73
        %p192 = pneg %p70
        %p193 = pneg %p94
        %p194 = pneg %p91
        %p195 = pneg %p120
        %p196 = pneg %p117
        %p197 = scmp.lt.s32.totalorder %s21, 1
        %s198 = scalar_select %p197, %s21, 1
        %s199 = smul.addr %s198, 4
        %s200 = smul.addr %s199, 8
        %s201 = scalar_lea.vmem %s3, %s200
        %s202 = smul.u32 2, %s22
        %p203 = scmp.lt.s32.totalorder %s21, 1
        %s204 = scalar_select %p203, %s21, 1
        %s205 = smul.addr %s204, 4
        %s206 = smul.addr %s205, 8
        %s207 = scalar_lea.vmem %s3, %s206
        %p208 = scmp.eq.s32.totalorder %s22, 0
        // Predicated region
        $region37: #{tpu_custom_call.1} parent=31 // pred_check
          %p209 = pneg %p208
        $region38: #{tpu_custom_call.1} parent=31 // pred_check_branch
          %211 = sbr.rel (%p209) target = $region40
        $region39: #{tpu_custom_call.1} parent=31 // pred_region
          %212 = vst [vmem:[#allocation2] sm:$0xff] 0.0
          %213 = vst [vmem:[#allocation2 + $0x8] sm:$0xff] 0.0
          %214 = vst [vmem:[#allocation2 + $0x10] sm:$0xff] 0.0
          %215 = vst [vmem:[#allocation2 + $0x18] sm:$0xff] 0.0
          %216 = vst [vmem:[#allocation2 + $0x20] sm:$0xff] 0.0
          %217 = vst [vmem:[#allocation2 + $0x28] sm:$0xff] 0.0
          %218 = vst [vmem:[#allocation2 + $0x30] sm:$0xff] 0.0
          %219 = vst [vmem:[#allocation2 + $0x38] sm:$0xff] 0.0
          %220 = vst [vmem:[#allocation3] sm:$0xff] -inf
          %221 = vst [vmem:[#allocation3 + $0x8] sm:$0xff] -inf
          %222 = vst [vmem:[#allocation3 + $0x10] sm:$0xff] -inf
          %223 = vst [vmem:[#allocation3 + $0x18] sm:$0xff] -inf
          %224 = vst [vmem:[#allocation3 + $0x20] sm:$0xff] -inf
          %225 = vst [vmem:[#allocation3 + $0x28] sm:$0xff] -inf
          %226 = vst [vmem:[#allocation3 + $0x30] sm:$0xff] -inf
          %227 = vst [vmem:[#allocation3 + $0x38] sm:$0xff] -inf
        $region40: #{tpu_custom_call.1} parent=31 // pred_fallthru
          _
        %v228 = vld [vmem:[%s179] sm:$0xff]
        %v229 = vld [vmem:[%s179 + $0x8] sm:$0xff]
        %v230 = vld [vmem:[%s179 + $0x10] sm:$0xff]
        %v231 = vld [vmem:[%s179 + $0x18] sm:$0xff]
        %v232 = vld [vmem:[%s179 + $0x20] sm:$0xff]
        %v233 = vld [vmem:[%s179 + $0x28] sm:$0xff]
        %v234 = vld [vmem:[%s179 + $0x30] sm:$0xff]
        %v235 = vld [vmem:[%s179 + $0x38] sm:$0xff]
        %v236 = vadd.f32 %v228, 0.0
        %v237 = vadd.f32 %v229, 0.0
        %v238 = vadd.f32 %v230, 0.0
        %v239 = vadd.f32 %v231, 0.0
        %v240 = vadd.f32 %v232, 0.0
        %v241 = vadd.f32 %v233, 0.0
        %v242 = vadd.f32 %v234, 0.0
        %v243 = vadd.f32 %v235, 0.0
        %v244 = vld [vmem:[#allocation2] sm:$0xff]
        %v245 = vld [vmem:[#allocation2 + $0x8] sm:$0xff]
        %v246 = vld [vmem:[#allocation2 + $0x10] sm:$0xff]
        %v247 = vld [vmem:[#allocation2 + $0x18] sm:$0xff]
        %v248 = vld [vmem:[#allocation2 + $0x20] sm:$0xff]
        %v249 = vld [vmem:[#allocation2 + $0x28] sm:$0xff]
        %v250 = vld [vmem:[#allocation2 + $0x30] sm:$0xff]
        %v251 = vld [vmem:[#allocation2 + $0x38] sm:$0xff]
        %v252 = vadd.f32 %v244, %v236
        %v253 = vadd.f32 %v245, %v237
        %v254 = vadd.f32 %v246, %v238
        %v255 = vadd.f32 %v247, %v239
        %v256 = vadd.f32 %v248, %v240
        %v257 = vadd.f32 %v249, %v241
        %v258 = vadd.f32 %v250, %v242
        %v259 = vadd.f32 %v251, %v243
        %260 = vst [vmem:[#allocation2] sm:$0xff] %v252
        %261 = vst [vmem:[#allocation2 + $0x8] sm:$0xff] %v253
        %262 = vst [vmem:[#allocation2 + $0x10] sm:$0xff] %v254
        %263 = vst [vmem:[#allocation2 + $0x18] sm:$0xff] %v255
        %264 = vst [vmem:[#allocation2 + $0x20] sm:$0xff] %v256
        %265 = vst [vmem:[#allocation2 + $0x28] sm:$0xff] %v257
        %266 = vst [vmem:[#allocation2 + $0x30] sm:$0xff] %v258
        %267 = vst [vmem:[#allocation2 + $0x38] sm:$0xff] %v259
        %v268 = vld [vmem:[#allocation3] sm:$0xff]
        %v269 = vld [vmem:[#allocation3 + $0x8] sm:$0xff]
        %v270 = vld [vmem:[#allocation3 + $0x10] sm:$0xff]
        %v271 = vld [vmem:[#allocation3 + $0x18] sm:$0xff]
        %v272 = vld [vmem:[#allocation3 + $0x20] sm:$0xff]
        %v273 = vld [vmem:[#allocation3 + $0x28] sm:$0xff]
        %v274 = vld [vmem:[#allocation3 + $0x30] sm:$0xff]
        %v275 = vld [vmem:[#allocation3 + $0x38] sm:$0xff]
        %v276 = vmax.f32 %v268, %v228
        %v277 = vmax.f32 %v269, %v229
        %v278 = vmax.f32 %v270, %v230
        %v279 = vmax.f32 %v271, %v231
        %v280 = vmax.f32 %v272, %v232
        %v281 = vmax.f32 %v273, %v233
        %v282 = vmax.f32 %v274, %v234
        %v283 = vmax.f32 %v275, %v235
        %284 = vst [vmem:[#allocation3] sm:$0xff] %v276
        %285 = vst [vmem:[#allocation3 + $0x8] sm:$0xff] %v277
        %286 = vst [vmem:[#allocation3 + $0x10] sm:$0xff] %v278
        %287 = vst [vmem:[#allocation3 + $0x18] sm:$0xff] %v279
        %288 = vst [vmem:[#allocation3 + $0x20] sm:$0xff] %v280
        %289 = vst [vmem:[#allocation3 + $0x28] sm:$0xff] %v281
        %290 = vst [vmem:[#allocation3 + $0x30] sm:$0xff] %v282
        %291 = vst [vmem:[#allocation3 + $0x38] sm:$0xff] %v283
        // Predicated region
        $region41: #{tpu_custom_call.1} parent=31 // pred_check
          %p292 = pneg %p208
        $region42: #{tpu_custom_call.1} parent=31 // pred_check_branch
          %294 = sbr.rel (%p292) target = $region44
        $region43: #{tpu_custom_call.1} parent=31 // pred_region
          %v295 = vld [vmem:[#allocation2] sm:$0xff]
          %v296 = vld [vmem:[#allocation2 + $0x8] sm:$0xff]
          %v297 = vld [vmem:[#allocation2 + $0x10] sm:$0xff]
          %v298 = vld [vmem:[#allocation2 + $0x18] sm:$0xff]
          %v299 = vld [vmem:[#allocation2 + $0x20] sm:$0xff]
          %v300 = vld [vmem:[#allocation2 + $0x28] sm:$0xff]
          %v301 = vld [vmem:[#allocation2 + $0x30] sm:$0xff]
          %v302 = vld [vmem:[#allocation2 + $0x38] sm:$0xff]
          %v303 = vadd.f32 %v295, %v296
          %304 = vadd.xlane.f32.xlu0 %v303
          %v305 = vpop.xlane.xlu0 %304
          %v306 = vadd.f32 %v297, %v298
          %307 = vadd.xlane.f32.xlu0 %v306
          %v308 = vpop.xlane.xlu0 %307
          %v309 = vadd.f32 %v299, %v300
          %310 = vadd.xlane.f32.xlu0 %v309
          %v311 = vpop.xlane.xlu0 %310
          %v312 = vadd.f32 %v301, %v302
          %313 = vadd.xlane.f32.xlu0 %v312
          %v314 = vpop.xlane.xlu0 %313
          %v315 = vmul.f32 %v305, 0.00390625
          %v316 = vmul.f32 %v308, 0.00390625
          %v317 = vmul.f32 %v311, 0.00390625
          %v318 = vmul.f32 %v314, 0.00390625
          %v319 = vld [vmem:[#allocation3] sm:$0xff]
          %v320 = vld [vmem:[#allocation3 + $0x8] sm:$0xff]
          %v321 = vld [vmem:[#allocation3 + $0x10] sm:$0xff]
          %v322 = vld [vmem:[#allocation3 + $0x18] sm:$0xff]
          %v323 = vld [vmem:[#allocation3 + $0x20] sm:$0xff]
          %v324 = vld [vmem:[#allocation3 + $0x28] sm:$0xff]
          %v325 = vld [vmem:[#allocation3 + $0x30] sm:$0xff]
          %v326 = vld [vmem:[#allocation3 + $0x38] sm:$0xff]
          %v327 = vmax.f32 %v319, %v320
          %328 = vmax.xlane.f32.xlu0 %v327
          %v329 = vpop.xlane.xlu0 %328
          %v330 = vmax.f32 %v321, %v322
          %331 = vmax.xlane.f32.xlu0 %v330
          %v332 = vpop.xlane.xlu0 %331
          %v333 = vmax.f32 %v323, %v324
          %334 = vmax.xlane.f32.xlu0 %v333
          %v335 = vpop.xlane.xlu0 %334
          %v336 = vmax.f32 %v325, %v326
          %337 = vmax.xlane.f32.xlu0 %v336
          %v338 = vpop.xlane.xlu0 %337
          %vm339 = vcmask 7168
          %v340 = vsel %vm339, %v315, %v329
          %v341 = vsel %vm339, %v316, %v332
          %v342 = vsel %vm339, %v317, %v335
          %v343 = vsel %vm339, %v318, %v338
          %v344 = vld [vmem:[%s1] sm:$0x3]
          %vm345 = vcmask 261120
          %v347 = vsel %vm345, %v344, 0
          %349 = vmatprep.subr.mxu0 0.0
          %350 = vmatpush1.msra.mxu0 %v340
          %351 = vmatprep.subr.mxu0 0.0
          %352 = vmatpush1.msra.mxu0 %v341
          %353 = vmatprep.subr.mxu0 0.0
          %354 = vmatpush1.msra.mxu0 %v342
          %355 = vmatprep.subr.mxu0 0.0
          %356 = vmatpush1.msra.mxu0 %v343
          %357 = vmatprep.subr.mxu0 0.0
          %358 = vmatpush1.msra.mxu0 0.0
          %359 = vmatprep.subr.mxu0 0.0
          %360 = vmatpush1.msra.mxu0 0.0
          %361 = vmatprep.subr.mxu0 0.0
          %362 = vmatpush1.msra.mxu0 0.0
          %363 = vmatprep.subr.mxu0 0.0
          %364 = vmatpush1.msra.mxu0 0.0
          %365 = vmatprep.subr.mxu0 0.0
          %366 = vmatpush1.msra.mxu0 0.0
          %367 = vmatprep.subr.mxu0 0.0
          %368 = vmatpush1.msra.mxu0 0.0
          %369 = vmatprep.subr.mxu0 0.0
          %370 = vmatpush1.msra.mxu0 0.0
          %371 = vmatprep.subr.mxu0 0.0
          %372 = vmatpush1.msra.mxu0 0.0
          %373 = vmatprep.subr.mxu0 0.0
          %374 = vmatpush1.msra.mxu0 0.0
          %375 = vmatprep.subr.mxu0 0.0
          %376 = vmatpush1.msra.mxu0 0.0
          %377 = vmatprep.subr.mxu0 0.0
          %378 = vmatpush1.msra.mxu0 0.0
          %379 = vmatprep.subr.mxu0 0.0
          %380 = vmatpush1.msra.mxu0 0.0
          %381 = vmatprep.subr.mxu0 0.0
          %382 = vmatpush1.msra.mxu0 0.0
          %383 = vmatprep.subr.mxu0 0.0
          %384 = vmatpush1.msra.mxu0 0.0
          %385 = vmatprep.subr.mxu0 0.0
          %386 = vmatpush1.msra.mxu0 0.0
          %387 = vmatprep.subr.mxu0 0.0
          %388 = vmatpush1.msra.mxu0 0.0
          %389 = vmatprep.subr.mxu0 0.0
          %390 = vmatpush1.msra.mxu0 0.0
          %391 = vmatprep.subr.mxu0 0.0
          %392 = vmatpush1.msra.mxu0 0.0
          %393 = vmatprep.subr.mxu0 0.0
          %394 = vmatpush1.msra.mxu0 0.0
          %395 = vmatprep.subr.mxu0 0.0
          %396 = vmatpush1.msra.mxu0 0.0
          %397 = vmatprep.subr.mxu0 0.0
          %398 = vmatpush1.msra.mxu0 0.0
          %399 = vmatprep.subr.mxu0 0.0
          %400 = vmatpush1.msra.mxu0 0.0
          %401 = vmatprep.subr.mxu0 0.0
          %402 = vmatpush1.msra.mxu0 0.0
          %403 = vmatprep.subr.mxu0 0.0
          %404 = vmatpush1.msra.mxu0 0.0
          %405 = vmatprep.subr.mxu0 0.0
          %406 = vmatpush1.msra.mxu0 0.0
          %407 = vmatprep.subr.mxu0 0.0
          %408 = vmatpush1.msra.mxu0 0.0
          %409 = vmatprep.subr.mxu0 0.0
          %410 = vmatpush1.msra.mxu0 0.0
          %411 = vmatprep.subr.mxu0 0.0
          %412 = vmatpush1.msra.mxu0 0.0
          %413 = vmatprep.mubr.f32.mxu0 0.0
          %414 = vmatmul.mubr.f32.gmra.mrb[0].mxu0 %v347
          %v415 = vpop.f32.mrb[0].mxu0
          %v416 = vadd.f32 0.0, %v415
          %v417 = vpop.f32.mrb[0].mxu0
          %418 = vdwg.mxu0
          %v419 = vmax.f32 %v416, 0.0
          %v420 = vld [vmem:[%s2] sm:$0xff]
          %v421 = vld [vmem:[%s2 + $0x8] sm:$0xff]
          %v422 = vld [vmem:[%s2 + $0x10] sm:$0xff]
          %v423 = vld [vmem:[%s2 + $0x18] sm:$0xff]
          %vm424 = vcmask 15360
          %v426 = vsel %vm424, %v420, 0
          %v429 = vsel %vm424, %v421, 0
          %v432 = vsel %vm424, %v422, 0
          %v435 = vsel %vm424, %v423, 0
          %vm437 = vcmask 1041408
          %v439 = vsel %vm437, %v419, 0
          %441 = vmatprep.subr.mxu0 0.0
          %442 = vmatpush1.msra.mxu0 %v439
          %443 = vmatprep.subr.mxu0 0.0
          %444 = vmatpush1.msra.mxu0 0.0
          %445 = vmatprep.subr.mxu0 0.0
          %446 = vmatpush1.msra.mxu0 0.0
          %447 = vmatprep.subr.mxu0 0.0
          %448 = vmatpush1.msra.mxu0 0.0
          %449 = vmatprep.subr.mxu0 0.0
          %450 = vmatpush1.msra.mxu0 0.0
          %451 = vmatprep.subr.mxu0 0.0
          %452 = vmatpush1.msra.mxu0 0.0
          %453 = vmatprep.subr.mxu0 0.0
          %454 = vmatpush1.msra.mxu0 0.0
          %455 = vmatprep.subr.mxu0 0.0
          %456 = vmatpush1.msra.mxu0 0.0
          %457 = vmatprep.subr.mxu0 0.0
          %458 = vmatpush1.msra.mxu0 0.0
          %459 = vmatprep.subr.mxu0 0.0
          %460 = vmatpush1.msra.mxu0 0.0
          %461 = vmatprep.subr.mxu0 0.0
          %462 = vmatpush1.msra.mxu0 0.0
          %463 = vmatprep.subr.mxu0 0.0
          %464 = vmatpush1.msra.mxu0 0.0
          %465 = vmatprep.subr.mxu0 0.0
          %466 = vmatpush1.msra.mxu0 0.0
          %467 = vmatprep.subr.mxu0 0.0
          %468 = vmatpush1.msra.mxu0 0.0
          %469 = vmatprep.subr.mxu0 0.0
          %470 = vmatpush1.msra.mxu0 0.0
          %471 = vmatprep.subr.mxu0 0.0
          %472 = vmatpush1.msra.mxu0 0.0
          %473 = vmatprep.subr.mxu0 0.0
          %474 = vmatpush1.msra.mxu0 0.0
          %475 = vmatprep.subr.mxu0 0.0
          %476 = vmatpush1.msra.mxu0 0.0
          %477 = vmatprep.subr.mxu0 0.0
          %478 = vmatpush1.msra.mxu0 0.0
          %479 = vmatprep.subr.mxu0 0.0
          %480 = vmatpush1.msra.mxu0 0.0
          %481 = vmatprep.subr.mxu0 0.0
          %482 = vmatpush1.msra.mxu0 0.0
          %483 = vmatprep.subr.mxu0 0.0
          %484 = vmatpush1.msra.mxu0 0.0
          %485 = vmatprep.subr.mxu0 0.0
          %486 = vmatpush1.msra.mxu0 0.0
          %487 = vmatprep.subr.mxu0 0.0
          %488 = vmatpush1.msra.mxu0 0.0
          %489 = vmatprep.subr.mxu0 0.0
          %490 = vmatpush1.msra.mxu0 0.0
          %491 = vmatprep.subr.mxu0 0.0
          %492 = vmatpush1.msra.mxu0 0.0
          %493 = vmatprep.subr.mxu0 0.0
          %494 = vmatpush1.msra.mxu0 0.0
          %495 = vmatprep.subr.mxu0 0.0
          %496 = vmatpush1.msra.mxu0 0.0
          %497 = vmatprep.subr.mxu0 0.0
          %498 = vmatpush1.msra.mxu0 0.0
          %499 = vmatprep.subr.mxu0 0.0
          %500 = vmatpush1.msra.mxu0 0.0
          %501 = vmatprep.subr.mxu0 0.0
          %502 = vmatpush1.msra.mxu0 0.0
          %503 = vmatprep.subr.mxu0 0.0
          %504 = vmatpush1.msra.mxu0 0.0
          %505 = vmatprep.mubr.f32.mxu0 0.0
          %506 = vmatmul.mubr.f32.gmra.mrb[0].mxu0 %v426
          %v507 = vpop.f32.mrb[0].mxu0
          %v508 = vadd.f32 0.0, %v507
          %v509 = vpop.f32.mrb[0].mxu0
          %510 = vmatprep.mubr.f32.mxu0 0.0
          %511 = vmatmul.mubr.f32.gmra.mrb[0].mxu0 %v429
          %v512 = vpop.f32.mrb[0].mxu0
          %v513 = vadd.f32 0.0, %v512
          %v514 = vpop.f32.mrb[0].mxu0
          %515 = vmatprep.mubr.f32.mxu0 0.0
          %516 = vmatmul.mubr.f32.gmra.mrb[0].mxu0 %v432
          %v517 = vpop.f32.mrb[0].mxu0
          %v518 = vadd.f32 0.0, %v517
          %v519 = vpop.f32.mrb[0].mxu0
          %520 = vmatprep.mubr.f32.mxu0 0.0
          %521 = vmatmul.mubr.f32.gmra.mrb[0].mxu0 %v435
          %v522 = vpop.f32.mrb[0].mxu0
          %v523 = vadd.f32 0.0, %v522
          %v524 = vpop.f32.mrb[0].mxu0
          %525 = vdwg.mxu0
          %530 = vrot.lane.b32.xlu0 %v508, 127
          %v531 = vpop.permute.xlu0 %530
          %532 = vrot.lane.b32.xlu0 %v513, 127
          %v533 = vpop.permute.xlu0 %532
          %534 = vrot.lane.b32.xlu0 %v518, 127
          %v535 = vpop.permute.xlu0 %534
          %536 = vrot.lane.b32.xlu0 %v523, 127
          %v537 = vpop.permute.xlu0 %536
          %v542 = vmul.f32 %v508, %v531
          %v543 = vmul.f32 %v513, %v533
          %v544 = vmul.f32 %v518, %v535
          %v545 = vmul.f32 %v523, %v537
          %v546 = vxor.u32 %v542, 2147483648
          %v547 = vxor.u32 %v543, 2147483648
          %v548 = vxor.u32 %v544, 2147483648
          %v549 = vxor.u32 %v545, 2147483648
          %v550 = vmul.f32 %v546, 1.442695
          %v551 = vpow.pop %v550
          %v552 = vmul.f32 %v547, 1.442695
          %v553 = vpow.pop %v552
          %v554 = vmul.f32 %v548, 1.442695
          %v555 = vpow.pop %v554
          %v556 = vmul.f32 %v549, 1.442695
          %v557 = vpow.pop %v556
          %v558 = vadd.f32 %v551, 1.0
          %v559 = vadd.f32 %v553, 1.0
          %v560 = vadd.f32 %v555, 1.0
          %v561 = vadd.f32 %v557, 1.0
          %v562 = vrcp.pop %v558
          %v563 = vmul.f32 1.0, %v562
          %v564 = vrcp.pop %v559
          %v565 = vmul.f32 1.0, %v564
          %v566 = vrcp.pop %v560
          %v567 = vmul.f32 1.0, %v566
          %v568 = vrcp.pop %v561
          %v569 = vmul.f32 1.0, %v568
          %570 = vst.msk [vmem:[%s207] sm:$0xff] %vm339, %v563
          %571 = vst.msk [vmem:[%s207 + $0x8] sm:$0xff] %vm339, %v565
          %572 = vst.msk [vmem:[%s207 + $0x10] sm:$0xff] %vm339, %v567
          %573 = vst.msk [vmem:[%s207 + $0x18] sm:$0xff] %vm339, %v569
        $region44: #{tpu_custom_call.1} parent=31 // pred_fallthru
          _
        %p574 = scmp.lt.s32.totalorder %s21, 1
        %s575 = scalar_select %p574, %s21, 1
        %s576 = smul.addr %s575, 4
        %s577 = smul.addr %s576, 8
        %s578 = scalar_lea.vmem %s3, %s577
        // Predicated region
        $region45: #{tpu_custom_call.1} parent=31 // pred_check
          %p579 = pneg %p117
        $region46: #{tpu_custom_call.1} parent=31 // pred_check_branch
          %581 = sbr.rel (%p579) target = $region48
        $region47: #{tpu_custom_call.1} parent=31 // pred_region
          _
        $region48: #{tpu_custom_call.1} parent=31 // pred_fallthru
          _
      $region32: #{tpu_custom_call.1} parent=5 // pred_fallthru
        _
      %p582 = scmp.le.s32.totalorder 2, %s12
      // Predicated region
      $region49: #{tpu_custom_call.1} parent=5 // pred_check
        %p583 = pneg %p582
      $region50: #{tpu_custom_call.1} parent=5 // pred_check_branch
        %585 = sbr.rel (%p583) target = $region52
      $region51: #{tpu_custom_call.1} parent=5 // pred_region
        %s586 = ssub.s32 %s12, 2
        // Predicated region
        $region53: #{tpu_custom_call.1} parent=51 // pred_check
          %p587 = pneg %p123
        $region54: #{tpu_custom_call.1} parent=51 // pred_check_branch
          %589 = sbr.rel (%p587) target = $region56
        $region55: #{tpu_custom_call.1} parent=51 // pred_region
          %p590 = scmp.lt.s32.totalorder %s23, 1
          %s591 = scalar_select %p590, %s23, 1
          %s592 = smul.addr %s591, 4
          %s593 = smul.addr %s592, 8
          %s594 = scalar_lea.vmem %s3, %s593
        $region56: #{tpu_custom_call.1} parent=51 // pred_fallthru
          _
      $region52: #{tpu_custom_call.1} parent=5 // pred_fallthru
        _
    $region6: #{tpu_custom_call.1} parent=1 // loop_footer
      %s16 = sadd.s32 1, %s12
    $region7: #{tpu_custom_call.1} parent=1 // loop_footer_branch
      %11 = sbr.rel target = $region3
    $region8: #{tpu_custom_call.1} parent=1 // loop_exit
      _
    %595 = vsyncpa [#allocation5], 1
    %s596 = scalar_lea.sflag [#allocation5], 1
    %597 = vsyncpa %s596, 1

</llo_original>
